<compile_context>
chip_gen: v7x
topology: tpu7x:2x2x1
jax: 0.10.0
libtpu: 0.0.40
codegen_flags: <defaults>
</compile_context>

<pallas_src>
import numpy as np
import jax
import jax.numpy as jnp
from jax.experimental import pallas as pl
from jax.experimental.pallas import tpu as pltpu

MIN_VAL = -0.1
MAX_VAL = 0.6

H = 8
W = 8
HW = H * W          # 64
CIN = 62
CMID = 31           # channels after the two fused 1x1 convs
COUT = 60


# ---------------------------------------------------------------------------
# Pallas kernel: chained small MXU matmuls + bias + clamp (gridless).
# ---------------------------------------------------------------------------
def _fused_kernel(x_ref, a_ref, w3t_ref, q_ref, b_ref, o_ref):
    # x   : (62, 64)    channel-major input (pure reshape of NCHW)
    # a   : (31, 62)    fused 1x1-conv channel transform (linear part)
    # w3t : (4, 60, 31) 0.25 * conv_1 taps (s = kh*2+kw), transposed
    # q   : (4, 64, 1)  combined avg-pool rows (p2 @ p1)[s, :]
    # b   : (60, 1)     fully folded bias
    t = jnp.dot(a_ref[...], x_ref[...],
                preferred_element_type=jnp.float32)                 # (31, 64)
    acc = b_ref[...]                                                # (60, 1)
    for s in range(4):                                              # unrolled
        v = jnp.dot(w3t_ref[s], t,
                    preferred_element_type=jnp.float32)             # (60, 64)
        acc = acc + jnp.dot(v, q_ref[s],
                            preferred_element_type=jnp.float32)     # (60, 1)
    o_ref[...] = jnp.clip(acc, MIN_VAL, MAX_VAL)


# ---------------------------------------------------------------------------
# Host-side folding helpers (run once, not per call).
# ---------------------------------------------------------------------------
def avgpool_matrix(h, w, k, s, p):
    """Matrix M (OH*OW, H*W): flat_out = M @ flat_in reproduces
    nn.AvgPool2d(k, s, p) with zero padding and count_include_pad=True."""
    # TODO(synk): PyTorch's runtime check rejects padding > kernel_size // 2
    # (the first pool uses pad=5, k=6); we implement the mathematical zero-pad
    # average-pool semantics instead.
    oh_n = (h + 2 * p - k) // s + 1
    ow_n = (w + 2 * p - k) // s + 1
    m = np.zeros((oh_n * ow_n, h * w), dtype=np.float32)
    for oh in range(oh_n):
        for ow in range(ow_n):
            hs, ws = oh * s - p, ow * s - p
            he, we = min(hs + k, h + p), min(ws + k, w + p)
            pool_size = (he - hs) * (we - ws)  # count_include_pad=True
            for hh in range(max(hs, 0), min(he, h)):
                for ww in range(max(ws, 0), min(we, w)):
                    m[oh * ow_n + ow, hh * w + ww] = 1.0 / pool_size
    return m


def init_params(key):
    """Deterministic Conv2d-style init (uniform +/- 1/sqrt(fan_in))."""
    ks = jax.random.split(key, 6)

    def u(k, shape, fan_in):
        bound = 1.0 / np.sqrt(fan_in)
        return jax.random.uniform(k, shape, jnp.float32, -bound, bound)

    w1 = u(ks[0], (32, 62, 1, 1), 62)
    b1 = u(ks[1], (32,), 62)
    w2 = u(ks[2], (31, 32, 1, 1), 32)
    b2 = u(ks[3], (31,), 32)
    w3 = u(ks[4], (60, 31, 2, 2), 31 * 2 * 2)
    b3 = u(ks[5], (60,), 31 * 2 * 2)

    w1t = w1[:, :, 0, 0].T                                     # (62, 32)
    w2t = w2[:, :, 0, 0].T                                     # (32, 31)
    w3r = jnp.transpose(w3, (2, 3, 1, 0)).reshape(4, 31, 60)   # rows = kh*2+kw
    return (w1t, b1.reshape(1, 32), w2t, b2.reshape(1, 31),
            w3r, b3.reshape(1, 60))


def fold_params(params):
    """Fold the affine chain into small factored operands (float64 on host)."""
    w1t, b1, w2t, b2, w3r, b3 = (np.asarray(p, dtype=np.float64) for p in params)
    p1 = avgpool_matrix(8, 8, 6, 6, 5).astype(np.float64)   # (9, 64)
    p2 = avgpool_matrix(3, 3, 2, 2, 1).astype(np.float64)   # (4, 9)

    q = p2 @ p1                                   # (4, 64)  combined spatial pooling
    a = w1t @ w2t                                 # (62, 31) fused 1x1 convs (linear)

    # Bias propagation (pool rows do NOT sum to 1 because of zero padding).
    r1 = q.sum(axis=1, keepdims=True)             # (4, 1)
    r2 = p2.sum(axis=1, keepdims=True)            # (4, 1)
    y4_bias = r1 @ (b1 @ w2t) + r2 @ b2           # (4, 31)
    w3f = w3r.reshape(4 * 31, 60)                 # (124, 60)
    bias = 0.25 * (y4_bias.reshape(1, 124) @ w3f + b3)   # (1, 60)

    a_t = a.T                                     # (31, 62)
    w3t = 0.25 * np.transpose(w3r, (0, 2, 1))     # (4, 60, 31), final pool folded
    q3 = q[:, :, None]                            # (4, 64, 1)
    b_col = bias.T                                # (60, 1)

    f32 = lambda v: jnp.asarray(v, dtype=jnp.float32)
    return f32(a_t), f32(w3t), f32(q3), f32(b_col)


# ---------------------------------------------------------------------------
# Model call (jitted; input is a pure reshape, output a pure reshape).
# ---------------------------------------------------------------------------
@jax.jit
def run_model(x1, a_t, w3t, q3, b_col):
    x_cm = x1.reshape(CIN, HW)   # (62, 64) channel-major: pure reshape of NCHW

    flops = (2 * CMID * CIN * HW                     # channel transform
             + 4 * 2 * COUT * CMID * HW              # 4 conv_1 taps
             + 4 * 2 * COUT * HW * 1)                # 4 pooled reductions
    bytes_accessed = 4 * (CIN * HW + CMID * CIN + 4 * COUT * CMID
                          + 4 * HW + COUT + COUT)

    vmem = pl.BlockSpec(memory_space=pltpu.MemorySpace.VMEM)
    out = pl.pallas_call(
        _fused_kernel,
        out_shape=jax.ShapeDtypeStruct((COUT, 1), jnp.float32),
        in_specs=[vmem] * 5,
        out_specs=vmem,
        cost_estimate=pl.CostEstimate(flops=flops, transcendentals=0,
                                      bytes_accessed=bytes_accessed),
    )(x_cm, a_t, w3t, q3, b_col)
    return out.reshape(1, COUT, 1, 1)   # back to NCHW


# ---------------------------------------------------------------------------
# Unfused float64 reference (same zero-pad pooling semantics) for verification.
# ---------------------------------------------------------------------------
def reference(x1, params):
    w1t, b1, w2t, b2, w3, b3 = (np.asarray(p, dtype=np.float64) for p in params)
    p1 = avgpool_matrix(8, 8, 6, 6, 5).astype(np.float64)
    p2 = avgpool_matrix(3, 3, 2, 2, 1).astype(np.float64)
    x = np.asarray(x1, dtype=np.float64)[0].transpose(1, 2, 0).reshape(64, 62)
    y1 = x @ w1t + b1                    # conv (1x1, 62->32)
    y2 = p1 @ y1                         # avg_pool2d 6/6/5
    y3 = y2 @ w2t + b2                   # conv1 (1x1, 32->31)
    y4 = p2 @ y3                         # avg_pool2d_1 2/2/1
    acc = b3.copy()
    for s in range(4):                   # conv_1 (2x2 stride 2) on 2x2 map
        acc = acc + y4[s:s + 1, :] @ w3[s]
    return np.clip(0.25 * acc, MIN_VAL, MAX_VAL).reshape(1, 60, 1, 1)


if __name__ == "__main__":
    key = jax.random.PRNGKey(0)
    kx, kp = jax.random.split(key)
    x1 = jax.random.normal(kx, (1, CIN, H, W), dtype=jnp.float32)
    params = init_params(kp)
    folded = fold_params(params)

    out = run_model(x1, *folded)
    jax.block_until_ready(out)

    assert out.shape == (1, COUT, 1, 1)
    ref = reference(x1, params)
    assert np.allclose(np.asarray(out), ref, atol=2e-3, rtol=2e-3)
    assert bool(jnp.all(out >= MIN_VAL)) and bool(jnp.all(out <= MAX_VAL))
    print("KERNEL_OK")
</pallas_src>

<mosaic_0001>
module attributes {stable_mosaic.version = 11 : i64} {
  func.func @_fused_kernel(%arg0: memref<62x64xf32, #tpu.memory_space<vmem>>, %arg1: memref<31x62xf32, #tpu.memory_space<vmem>>, %arg2: memref<4x60x31xf32, #tpu.memory_space<vmem>>, %arg3: memref<4x64x1xf32, #tpu.memory_space<vmem>>, %arg4: memref<60x1xf32, #tpu.memory_space<vmem>>, %arg5: memref<60x1xf32, #tpu.memory_space<vmem>>) attributes {dimension_semantics = [], scalar_prefetch = 0 : i64, scratch_operands = 0 : i64, tpu.core_type = #tpu.core_type<tc>} {
    %c0 = arith.constant 0 : index
    %c0_0 = arith.constant 0 : index
    %0 = vector.load %arg1[%c0, %c0_0] : memref<31x62xf32, #tpu.memory_space<vmem>>, vector<31x62xf32>
    %c0_1 = arith.constant 0 : index
    %c0_2 = arith.constant 0 : index
    %1 = vector.load %arg0[%c0_1, %c0_2] : memref<62x64xf32, #tpu.memory_space<vmem>>, vector<62x64xf32>
    %cst = arith.constant dense<0.000000e+00> : vector<31x64xf32>
    %2 = tpu.matmul %0, %1, %cst {dimension_numbers = #tpu.dot_dimension_numbers<[1], [0], [0], [1], [0, 0, 1, 1], [], []>} : vector<31x62xf32>, vector<62x64xf32>, vector<31x64xf32> -> vector<31x64xf32>
    %c0_3 = arith.constant 0 : index
    %c0_4 = arith.constant 0 : index
    %3 = vector.load %arg4[%c0_3, %c0_4] : memref<60x1xf32, #tpu.memory_space<vmem>>, vector<60x1xf32>
    %c0_5 = arith.constant 0 : index
    %c0_6 = arith.constant 0 : index
    %c0_7 = arith.constant 0 : index
    %4 = vector.load %arg2[%c0_5, %c0_6, %c0_7] : memref<4x60x31xf32, #tpu.memory_space<vmem>>, vector<1x60x31xf32>
    %5 = vector.shape_cast %4 : vector<1x60x31xf32> to vector<60x31xf32>
    %cst_8 = arith.constant dense<0.000000e+00> : vector<60x64xf32>
    %6 = tpu.matmul %5, %2, %cst_8 {dimension_numbers = #tpu.dot_dimension_numbers<[1], [0], [0], [1], [0, 0, 1, 1], [], []>} : vector<60x31xf32>, vector<31x64xf32>, vector<60x64xf32> -> vector<60x64xf32>
    %c0_9 = arith.constant 0 : index
    %c0_10 = arith.constant 0 : index
    %c0_11 = arith.constant 0 : index
    %7 = vector.load %arg3[%c0_9, %c0_10, %c0_11] : memref<4x64x1xf32, #tpu.memory_space<vmem>>, vector<1x64x1xf32>
    %8 = vector.shape_cast %7 : vector<1x64x1xf32> to vector<64x1xf32>
    %cst_12 = arith.constant dense<0.000000e+00> : vector<60x1xf32>
    %9 = tpu.matmul %6, %8, %cst_12 {dimension_numbers = #tpu.dot_dimension_numbers<[1], [0], [0], [1], [0, 0, 1, 1], [], []>} : vector<60x64xf32>, vector<64x1xf32>, vector<60x1xf32> -> vector<60x1xf32>
    %10 = arith.addf %3, %9 : vector<60x1xf32>
    %c1 = arith.constant 1 : index
    %c0_13 = arith.constant 0 : index
    %c0_14 = arith.constant 0 : index
    %11 = vector.load %arg2[%c1, %c0_13, %c0_14] : memref<4x60x31xf32, #tpu.memory_space<vmem>>, vector<1x60x31xf32>
    %12 = vector.shape_cast %11 : vector<1x60x31xf32> to vector<60x31xf32>
    %cst_15 = arith.constant dense<0.000000e+00> : vector<60x64xf32>
    %13 = tpu.matmul %12, %2, %cst_15 {dimension_numbers = #tpu.dot_dimension_numbers<[1], [0], [0], [1], [0, 0, 1, 1], [], []>} : vector<60x31xf32>, vector<31x64xf32>, vector<60x64xf32> -> vector<60x64xf32>
    %c1_16 = arith.constant 1 : index
    %c0_17 = arith.constant 0 : index
    %c0_18 = arith.constant 0 : index
    %14 = vector.load %arg3[%c1_16, %c0_17, %c0_18] : memref<4x64x1xf32, #tpu.memory_space<vmem>>, vector<1x64x1xf32>
    %15 = vector.shape_cast %14 : vector<1x64x1xf32> to vector<64x1xf32>
    %cst_19 = arith.constant dense<0.000000e+00> : vector<60x1xf32>
    %16 = tpu.matmul %13, %15, %cst_19 {dimension_numbers = #tpu.dot_dimension_numbers<[1], [0], [0], [1], [0, 0, 1, 1], [], []>} : vector<60x64xf32>, vector<64x1xf32>, vector<60x1xf32> -> vector<60x1xf32>
    %17 = arith.addf %10, %16 : vector<60x1xf32>
    %c2 = arith.constant 2 : index
    %c0_20 = arith.constant 0 : index
    %c0_21 = arith.constant 0 : index
    %18 = vector.load %arg2[%c2, %c0_20, %c0_21] : memref<4x60x31xf32, #tpu.memory_space<vmem>>, vector<1x60x31xf32>
    %19 = vector.shape_cast %18 : vector<1x60x31xf32> to vector<60x31xf32>
    %cst_22 = arith.constant dense<0.000000e+00> : vector<60x64xf32>
    %20 = tpu.matmul %19, %2, %cst_22 {dimension_numbers = #tpu.dot_dimension_numbers<[1], [0], [0], [1], [0, 0, 1, 1], [], []>} : vector<60x31xf32>, vector<31x64xf32>, vector<60x64xf32> -> vector<60x64xf32>
    %c2_23 = arith.constant 2 : index
    %c0_24 = arith.constant 0 : index
    %c0_25 = arith.constant 0 : index
    %21 = vector.load %arg3[%c2_23, %c0_24, %c0_25] : memref<4x64x1xf32, #tpu.memory_space<vmem>>, vector<1x64x1xf32>
    %22 = vector.shape_cast %21 : vector<1x64x1xf32> to vector<64x1xf32>
    %cst_26 = arith.constant dense<0.000000e+00> : vector<60x1xf32>
    %23 = tpu.matmul %20, %22, %cst_26 {dimension_numbers = #tpu.dot_dimension_numbers<[1], [0], [0], [1], [0, 0, 1, 1], [], []>} : vector<60x64xf32>, vector<64x1xf32>, vector<60x1xf32> -> vector<60x1xf32>
    %24 = arith.addf %17, %23 : vector<60x1xf32>
    %c3 = arith.constant 3 : index
    %c0_27 = arith.constant 0 : index
    %c0_28 = arith.constant 0 : index
    %25 = vector.load %arg2[%c3, %c0_27, %c0_28] : memref<4x60x31xf32, #tpu.memory_space<vmem>>, vector<1x60x31xf32>
    %26 = vector.shape_cast %25 : vector<1x60x31xf32> to vector<60x31xf32>
    %cst_29 = arith.constant dense<0.000000e+00> : vector<60x64xf32>
    %27 = tpu.matmul %26, %2, %cst_29 {dimension_numbers = #tpu.dot_dimension_numbers<[1], [0], [0], [1], [0, 0, 1, 1], [], []>} : vector<60x31xf32>, vector<31x64xf32>, vector<60x64xf32> -> vector<60x64xf32>
    %c3_30 = arith.constant 3 : index
    %c0_31 = arith.constant 0 : index
    %c0_32 = arith.constant 0 : index
    %28 = vector.load %arg3[%c3_30, %c0_31, %c0_32] : memref<4x64x1xf32, #tpu.memory_space<vmem>>, vector<1x64x1xf32>
    %29 = vector.shape_cast %28 : vector<1x64x1xf32> to vector<64x1xf32>
    %cst_33 = arith.constant dense<0.000000e+00> : vector<60x1xf32>
    %30 = tpu.matmul %27, %29, %cst_33 {dimension_numbers = #tpu.dot_dimension_numbers<[1], [0], [0], [1], [0, 0, 1, 1], [], []>} : vector<60x64xf32>, vector<64x1xf32>, vector<60x1xf32> -> vector<60x1xf32>
    %31 = arith.addf %24, %30 : vector<60x1xf32>
    %cst_34 = arith.constant -1.000000e-01 : f32
    %cst_35 = arith.constant 6.000000e-01 : f32
    %32 = vector.broadcast %cst_34 : f32 to vector<60x1xf32>
    %33 = arith.maximumf %32, %31 : vector<60x1xf32>
    %34 = vector.broadcast %cst_35 : f32 to vector<60x1xf32>
    %35 = arith.minimumf %34, %33 : vector<60x1xf32>
    %c0_36 = arith.constant 0 : index
    %c0_37 = arith.constant 0 : index
    %36 = vector.load %arg5[%c0_36, %c0_37] : memref<60x1xf32, #tpu.memory_space<vmem>>, vector<60x1xf32>
    tpu.vector_store %arg5[%c0_36, %c0_37], %35 {strides = array<i32>} : memref<60x1xf32, #tpu.memory_space<vmem>>, vector<60x1xf32>,
    return
  }
}

</mosaic_0001>

<llo_original>
// kernel: run_model.1
$region0: #{run_model.1}
  #allocation0 [shape = 'u32[]', space=smem, size = 0x4, offset = 0x4, fixed_abs, tag = 'smem constant byte address 0x4 - core index']
  #allocation1 [shape = 'u32[144,128]{1,0:T(1,128)}', space=vmem, size = 0x12000, scoped, tag = 'internal scratch']
  %s0 = inlined_call_operand.vmem [shape: f32[62,64], index: 0, kind: input, shape index: {}]
  %s1 = inlined_call_operand.vmem [shape: f32[31,62], index: 1, kind: input, shape index: {}]
  %s2 = inlined_call_operand.vmem [shape: f32[4,60,31], index: 2, kind: input, shape index: {}]
  %s3 = inlined_call_operand.vmem [shape: f32[4,64,1], index: 3, kind: input, shape index: {}]
  %s4 = inlined_call_operand.vmem [shape: f32[60,1], index: 4, kind: input, shape index: {}]
  %s5 = inlined_call_operand.vmem [shape: f32[60,1], index: 5, kind: output, shape index: {}]
  %s6 = sld [smem:[#allocation0]]
  $region30: #{run_model.1} parent=0
    _
  %s8 = ssub.s32 1, %s6
  %s9 = scalar_select 0, %s8, %s6
  // Predicated region
  $region2: #{run_model.1} parent=0 // pred_check
    _
  $region3: #{run_model.1} parent=0 // pred_check_branch
    %11 = sbr.rel (0) target = $region5
  $region4: #{run_model.1} parent=0 // pred_region
    _
  $region5: #{run_model.1} parent=0 // pred_fallthru
    _
  // Predicated region
  $region6: #{run_model.1} parent=0 // pred_check
    _
  $region7: #{run_model.1} parent=0 // pred_check_branch
    %13 = sbr.rel (0) target = $region9
  $region8: #{run_model.1} parent=0 // pred_region
    _
  $region9: #{run_model.1} parent=0 // pred_fallthru
    _
  // Predicated region
  $region10: #{run_model.1} parent=0 // pred_check
    _
  $region11: #{run_model.1} parent=0 // pred_check_branch
    %15 = sbr.rel (0) target = $region13
  $region12: #{run_model.1} parent=0 // pred_region
    _
  $region13: #{run_model.1} parent=0 // pred_fallthru
    _
  // Predicated region
  $region14: #{run_model.1} parent=0 // pred_check
    _
  $region15: #{run_model.1} parent=0 // pred_check_branch
    %17 = sbr.rel (0) target = $region17
  $region16: #{run_model.1} parent=0 // pred_region
    _
  $region17: #{run_model.1} parent=0 // pred_fallthru
    _
  // Predicated region
  $region18: #{run_model.1} parent=0 // pred_check
    _
  $region19: #{run_model.1} parent=0 // pred_check_branch
    %19 = sbr.rel (0) target = $region21
  $region20: #{run_model.1} parent=0 // pred_region
    _
  $region21: #{run_model.1} parent=0 // pred_fallthru
    _
  %v20 = vld [vmem:[%s1] sm:$0xff]
  %v21 = vld [vmem:[%s1 + $0x8] sm:$0xff]
  %v22 = vld [vmem:[%s1 + $0x10] sm:$0xff]
  %v23 = vld [vmem:[%s1 + $0x18] sm:$0x7f]
  %v24 = vld [vmem:[%s0] sm:$0xff]
  %v25 = vld [vmem:[%s0 + $0x8] sm:$0xff]
  %v26 = vld [vmem:[%s0 + $0x10] sm:$0xff]
  %v27 = vld [vmem:[%s0 + $0x18] sm:$0xff]
  %v28 = vld [vmem:[%s0 + $0x20] sm:$0xff]
  %v29 = vld [vmem:[%s0 + $0x28] sm:$0xff]
  %v30 = vld [vmem:[%s0 + $0x30] sm:$0xff]
  %v31 = vld [vmem:[%s0 + $0x38] sm:$0x3f]
  %vm32 = vcmask 506880
  %v34 = vsel %vm32, %v20, 0
  %v37 = vsel %vm32, %v21, 0
  %v40 = vsel %vm32, %v22, 0
  %v43 = vsel %vm32, %v23, 0
  %vm45 = vcmask 1045504
  %v47 = vsel %vm45, %v31, 0
  %49 = vmatprep.subr.mxu0 0.0
  %50 = vmatpush1.msra.mxu0 %v24
  %51 = vmatprep.subr.mxu0 0.0
  %52 = vmatpush1.msra.mxu0 %v25
  %53 = vmatprep.subr.mxu0 0.0
  %54 = vmatpush1.msra.mxu0 %v26
  %55 = vmatprep.subr.mxu0 0.0
  %56 = vmatpush1.msra.mxu0 %v27
  %57 = vmatprep.subr.mxu0 0.0
  %58 = vmatpush1.msra.mxu0 %v28
  %59 = vmatprep.subr.mxu0 0.0
  %60 = vmatpush1.msra.mxu0 %v29
  %61 = vmatprep.subr.mxu0 0.0
  %62 = vmatpush1.msra.mxu0 %v30
  %63 = vmatprep.subr.mxu0 0.0
  %64 = vmatpush1.msra.mxu0 %v47
  %65 = vmatprep.subr.mxu0 0.0
  %66 = vmatpush1.msra.mxu0 0.0
  %67 = vmatprep.subr.mxu0 0.0
  %68 = vmatpush1.msra.mxu0 0.0
  %69 = vmatprep.subr.mxu0 0.0
  %70 = vmatpush1.msra.mxu0 0.0
  %71 = vmatprep.subr.mxu0 0.0
  %72 = vmatpush1.msra.mxu0 0.0
  %73 = vmatprep.subr.mxu0 0.0
  %74 = vmatpush1.msra.mxu0 0.0
  %75 = vmatprep.subr.mxu0 0.0
  %76 = vmatpush1.msra.mxu0 0.0
  %77 = vmatprep.subr.mxu0 0.0
  %78 = vmatpush1.msra.mxu0 0.0
  %79 = vmatprep.subr.mxu0 0.0
  %80 = vmatpush1.msra.mxu0 0.0
  %81 = vmatprep.subr.mxu0 0.0
  %82 = vmatpush1.msra.mxu0 0.0
  %83 = vmatprep.subr.mxu0 0.0
  %84 = vmatpush1.msra.mxu0 0.0
  %85 = vmatprep.subr.mxu0 0.0
  %86 = vmatpush1.msra.mxu0 0.0
  %87 = vmatprep.subr.mxu0 0.0
  %88 = vmatpush1.msra.mxu0 0.0
  %89 = vmatprep.subr.mxu0 0.0
  %90 = vmatpush1.msra.mxu0 0.0
  %91 = vmatprep.subr.mxu0 0.0
  %92 = vmatpush1.msra.mxu0 0.0
  %93 = vmatprep.subr.mxu0 0.0
  %94 = vmatpush1.msra.mxu0 0.0
  %95 = vmatprep.subr.mxu0 0.0
  %96 = vmatpush1.msra.mxu0 0.0
  %97 = vmatprep.subr.mxu0 0.0
  %98 = vmatpush1.msra.mxu0 0.0
  %99 = vmatprep.subr.mxu0 0.0
  %100 = vmatpush1.msra.mxu0 0.0
  %101 = vmatprep.subr.mxu0 0.0
  %102 = vmatpush1.msra.mxu0 0.0
  %103 = vmatprep.subr.mxu0 0.0
  %104 = vmatpush1.msra.mxu0 0.0
  %105 = vmatprep.subr.mxu0 0.0
  %106 = vmatpush1.msra.mxu0 0.0
  %107 = vmatprep.subr.mxu0 0.0
  %108 = vmatpush1.msra.mxu0 0.0
  %109 = vmatprep.subr.mxu0 0.0
  %110 = vmatpush1.msra.mxu0 0.0
  %111 = vmatprep.subr.mxu0 0.0
  %112 = vmatpush1.msra.mxu0 0.0
  %113 = vmatprep.mubr.f32.mxu0 0.0
  %114 = vmatmul.mubr.f32.gmra.mrb[0].mxu0 %v34
  %v115 = vpop.f32.mrb[0].mxu0
  %v116 = vadd.f32 0.0, %v115
  %v117 = vpop.f32.mrb[0].mxu0
  %118 = vmatprep.mubr.f32.mxu0 0.0
  %119 = vmatmul.mubr.f32.gmra.mrb[0].mxu0 %v37
  %v120 = vpop.f32.mrb[0].mxu0
  %v121 = vadd.f32 0.0, %v120
  %v122 = vpop.f32.mrb[0].mxu0
  %123 = vmatprep.mubr.f32.mxu0 0.0
  %124 = vmatmul.mubr.f32.gmra.mrb[0].mxu0 %v40
  %v125 = vpop.f32.mrb[0].mxu0
  %v126 = vadd.f32 0.0, %v125
  %v127 = vpop.f32.mrb[0].mxu0
  %128 = vmatprep.mubr.f32.mxu0 0.0
  %129 = vmatmul.mubr.f32.gmra.mrb[0].mxu0 %v43
  %v130 = vpop.f32.mrb[0].mxu0
  %v131 = vadd.f32 0.0, %v130
  %v132 = vpop.f32.mrb[0].mxu0
  %133 = vdwg.mxu0
  %v134 = vld [vmem:[%s4] sm:$0xff]
  %v135 = vld [vmem:[%s4 + $0x8] sm:$0xff]
  %v136 = vld [vmem:[%s4 + $0x10] sm:$0xff]
  %v137 = vld [vmem:[%s4 + $0x18] sm:$0xff]
  %v138 = vld [vmem:[%s4 + $0x20] sm:$0xff]
  %v139 = vld [vmem:[%s4 + $0x28] sm:$0xff]
  %v140 = vld [vmem:[%s4 + $0x30] sm:$0xff]
  %v141 = vld [vmem:[%s4 + $0x38] sm:$0xf]
  %v142 = vld [vmem:[%s2] sm:$0xff]
  %v143 = vld [vmem:[%s2 + $0x8] sm:$0xff]
  %v144 = vld [vmem:[%s2 + $0x10] sm:$0xff]
  %v145 = vld [vmem:[%s2 + $0x18] sm:$0xff]
  %v146 = vld [vmem:[%s2 + $0x20] sm:$0xff]
  %v147 = vld [vmem:[%s2 + $0x28] sm:$0xff]
  %v148 = vld [vmem:[%s2 + $0x30] sm:$0xff]
  %v149 = vld [vmem:[%s2 + $0x38] sm:$0xf]
  %vm150 = vcmask 252928
  %v152 = vsel %vm150, %v142, 0
  %v155 = vsel %vm150, %v143, 0
  %v158 = vsel %vm150, %v144, 0
  %v161 = vsel %vm150, %v145, 0
  %v164 = vsel %vm150, %v146, 0
  %v167 = vsel %vm150, %v147, 0
  %v170 = vsel %vm150, %v148, 0
  %v173 = vsel %vm150, %v149, 0
  %vm175 = vcmask 1046528
  %v177 = vsel %vm175, %v131, 0
  %179 = vmatprep.subr.mxu0 0.0
  %180 = vmatpush1.msra.mxu0 %v116
  %181 = vmatprep.subr.mxu0 0.0
  %182 = vmatpush1.msra.mxu0 %v121
  %183 = vmatprep.subr.mxu0 0.0
  %184 = vmatpush1.msra.mxu0 %v126
  %185 = vmatprep.subr.mxu0 0.0
  %186 = vmatpush1.msra.mxu0 %v177
  %187 = vmatprep.subr.mxu0 0.0
  %188 = vmatpush1.msra.mxu0 0.0
  %189 = vmatprep.subr.mxu0 0.0
  %190 = vmatpush1.msra.mxu0 0.0
  %191 = vmatprep.subr.mxu0 0.0
  %192 = vmatpush1.msra.mxu0 0.0
  %193 = vmatprep.subr.mxu0 0.0
  %194 = vmatpush1.msra.mxu0 0.0
  %195 = vmatprep.subr.mxu0 0.0
  %196 = vmatpush1.msra.mxu0 0.0
  %197 = vmatprep.subr.mxu0 0.0
  %198 = vmatpush1.msra.mxu0 0.0
  %199 = vmatprep.subr.mxu0 0.0
  %200 = vmatpush1.msra.mxu0 0.0
  %201 = vmatprep.subr.mxu0 0.0
  %202 = vmatpush1.msra.mxu0 0.0
  %203 = vmatprep.subr.mxu0 0.0
  %204 = vmatpush1.msra.mxu0 0.0
  %205 = vmatprep.subr.mxu0 0.0
  %206 = vmatpush1.msra.mxu0 0.0
  %207 = vmatprep.subr.mxu0 0.0
  %208 = vmatpush1.msra.mxu0 0.0
  %209 = vmatprep.subr.mxu0 0.0
  %210 = vmatpush1.msra.mxu0 0.0
  %211 = vmatprep.subr.mxu0 0.0
  %212 = vmatpush1.msra.mxu0 0.0
  %213 = vmatprep.subr.mxu0 0.0
  %214 = vmatpush1.msra.mxu0 0.0
  %215 = vmatprep.subr.mxu0 0.0
  %216 = vmatpush1.msra.mxu0 0.0
  %217 = vmatprep.subr.mxu0 0.0
  %218 = vmatpush1.msra.mxu0 0.0
  %219 = vmatprep.subr.mxu0 0.0
  %220 = vmatpush1.msra.mxu0 0.0
  %221 = vmatprep.subr.mxu0 0.0
  %222 = vmatpush1.msra.mxu0 0.0
  %223 = vmatprep.subr.mxu0 0.0
  %224 = vmatpush1.msra.mxu0 0.0
  %225 = vmatprep.subr.mxu0 0.0
  %226 = vmatpush1.msra.mxu0 0.0
  %227 = vmatprep.subr.mxu0 0.0
  %228 = vmatpush1.msra.mxu0 0.0
  %229 = vmatprep.subr.mxu0 0.0
  %230 = vmatpush1.msra.mxu0 0.0
  %231 = vmatprep.subr.mxu0 0.0
  %232 = vmatpush1.msra.mxu0 0.0
  %233 = vmatprep.subr.mxu0 0.0
  %234 = vmatpush1.msra.mxu0 0.0
  %235 = vmatprep.subr.mxu0 0.0
  %236 = vmatpush1.msra.mxu0 0.0
  %237 = vmatprep.subr.mxu0 0.0
  %238 = vmatpush1.msra.mxu0 0.0
  %239 = vmatprep.subr.mxu0 0.0
  %240 = vmatpush1.msra.mxu0 0.0
  %241 = vmatprep.subr.mxu0 0.0
  %242 = vmatpush1.msra.mxu0 0.0
  %243 = vmatprep.mubr.f32.mxu0 0.0
  %244 = vmatmul.mubr.f32.gmra.mrb[0].mxu0 %v152
  %v245 = vpop.f32.mrb[0].mxu0
  %v246 = vadd.f32 0.0, %v245
  %v247 = vpop.f32.mrb[0].mxu0
  %248 = vmatprep.mubr.f32.mxu0 0.0
  %249 = vmatmul.mubr.f32.gmra.mrb[0].mxu0 %v155
  %v250 = vpop.f32.mrb[0].mxu0
  %v251 = vadd.f32 0.0, %v250
  %v252 = vpop.f32.mrb[0].mxu0
  %253 = vmatprep.mubr.f32.mxu0 0.0
  %254 = vmatmul.mubr.f32.gmra.mrb[0].mxu0 %v158
  %v255 = vpop.f32.mrb[0].mxu0
  %v256 = vadd.f32 0.0, %v255
  %v257 = vpop.f32.mrb[0].mxu0
  %258 = vmatprep.mubr.f32.mxu0 0.0
  %259 = vmatmul.mubr.f32.gmra.mrb[0].mxu0 %v161
  %v260 = vpop.f32.mrb[0].mxu0
  %v261 = vadd.f32 0.0, %v260
  %v262 = vpop.f32.mrb[0].mxu0
  %263 = vmatprep.mubr.f32.mxu0 0.0
  %264 = vmatmul.mubr.f32.gmra.mrb[0].mxu0 %v164
  %v265 = vpop.f32.mrb[0].mxu0
  %v266 = vadd.f32 0.0, %v265
  %v267 = vpop.f32.mrb[0].mxu0
  %268 = vmatprep.mubr.f32.mxu0 0.0
  %269 = vmatmul.mubr.f32.gmra.mrb[0].mxu0 %v167
  %v270 = vpop.f32.mrb[0].mxu0
  %v271 = vadd.f32 0.0, %v270
  %v272 = vpop.f32.mrb[0].mxu0
  %273 = vmatprep.mubr.f32.mxu0 0.0
  %274 = vmatmul.mubr.f32.gmra.mrb[0].mxu0 %v170
  %v275 = vpop.f32.mrb[0].mxu0
  %v276 = vadd.f32 0.0, %v275
  %v277 = vpop.f32.mrb[0].mxu0
  %278 = vmatprep.mubr.f32.mxu0 0.0
  %279 = vmatmul.mubr.f32.gmra.mrb[0].mxu0 %v173
  %v280 = vpop.f32.mrb[0].mxu0
  %v281 = vadd.f32 0.0, %v280
  %v282 = vpop.f32.mrb[0].mxu0
  %283 = vdwg.mxu0
  %v284 = vld [vmem:[%s3] sm:$0xff]
  %v285 = vld [vmem:[%s3 + $0x8] sm:$0xff]
  %v286 = vld [vmem:[%s3 + $0x10] sm:$0xff]
  %v287 = vld [vmem:[%s3 + $0x18] sm:$0xff]
  %v288 = vld [vmem:[%s3 + $0x20] sm:$0xff]
  %v289 = vld [vmem:[%s3 + $0x28] sm:$0xff]
  %v290 = vld [vmem:[%s3 + $0x30] sm:$0xff]
  %v291 = vld [vmem:[%s3 + $0x38] sm:$0xff]
  %vm292 = vcmask 523264
  %v294 = vsel %vm292, %v246, 0
  %v297 = vsel %vm292, %v251, 0
  %v300 = vsel %vm292, %v256, 0
  %v303 = vsel %vm292, %v261, 0
  %v306 = vsel %vm292, %v266, 0
  %v309 = vsel %vm292, %v271, 0
  %v312 = vsel %vm292, %v276, 0
  %v315 = vsel %vm292, %v281, 0
  %317 = vmatprep.subr.mxu0 0.0
  %318 = vmatpush1.msra.mxu0 %v284
  %319 = vmatprep.subr.mxu0 0.0
  %320 = vmatpush1.msra.mxu0 %v285
  %321 = vmatprep.subr.mxu0 0.0
  %322 = vmatpush1.msra.mxu0 %v286
  %323 = vmatprep.subr.mxu0 0.0
  %324 = vmatpush1.msra.mxu0 %v287
  %325 = vmatprep.subr.mxu0 0.0
  %326 = vmatpush1.msra.mxu0 %v288
  %327 = vmatprep.subr.mxu0 0.0
  %328 = vmatpush1.msra.mxu0 %v289
  %329 = vmatprep.subr.mxu0 0.0
  %330 = vmatpush1.msra.mxu0 %v290
  %331 = vmatprep.subr.mxu0 0.0
  %332 = vmatpush1.msra.mxu0 %v291
  %333 = vmatprep.subr.mxu0 0.0
  %334 = vmatpush1.msra.mxu0 0.0
  %335 = vmatprep.subr.mxu0 0.0
  %336 = vmatpush1.msra.mxu0 0.0
  %337 = vmatprep.subr.mxu0 0.0
  %338 = vmatpush1.msra.mxu0 0.0
  %339 = vmatprep.subr.mxu0 0.0
  %340 = vmatpush1.msra.mxu0 0.0
  %341 = vmatprep.subr.mxu0 0.0
  %342 = vmatpush1.msra.mxu0 0.0
  %343 = vmatprep.subr.mxu0 0.0
  %344 = vmatpush1.msra.mxu0 0.0
  %345 = vmatprep.subr.mxu0 0.0
  %346 = vmatpush1.msra.mxu0 0.0
  %347 = vmatprep.subr.mxu0 0.0
  %348 = vmatpush1.msra.mxu0 0.0
  %349 = vmatprep.subr.mxu0 0.0
  %350 = vmatpush1.msra.mxu0 0.0
  %351 = vmatprep.subr.mxu0 0.0
  %352 = vmatpush1.msra.mxu0 0.0
  %353 = vmatprep.subr.mxu0 0.0
  %354 = vmatpush1.msra.mxu0 0.0
  %355 = vmatprep.subr.mxu0 0.0
  %356 = vmatpush1.msra.mxu0 0.0
  %357 = vmatprep.subr.mxu0 0.0
  %358 = vmatpush1.msra.mxu0 0.0
  %359 = vmatprep.subr.mxu0 0.0
  %360 = vmatpush1.msra.mxu0 0.0
  %361 = vmatprep.subr.mxu0 0.0
  %362 = vmatpush1.msra.mxu0 0.0
  %363 = vmatprep.subr.mxu0 0.0
  %364 = vmatpush1.msra.mxu0 0.0
  %365 = vmatprep.subr.mxu0 0.0
  %366 = vmatpush1.msra.mxu0 0.0
  %367 = vmatprep.subr.mxu0 0.0
  %368 = vmatpush1.msra.mxu0 0.0
  %369 = vmatprep.subr.mxu0 0.0
  %370 = vmatpush1.msra.mxu0 0.0
  %371 = vmatprep.subr.mxu0 0.0
  %372 = vmatpush1.msra.mxu0 0.0
  %373 = vmatprep.subr.mxu0 0.0
  %374 = vmatpush1.msra.mxu0 0.0
  %375 = vmatprep.subr.mxu0 0.0
  %376 = vmatpush1.msra.mxu0 0.0
  %377 = vmatprep.subr.mxu0 0.0
  %378 = vmatpush1.msra.mxu0 0.0
  %379 = vmatprep.subr.mxu0 0.0
  %380 = vmatpush1.msra.mxu0 0.0
  %381 = vmatprep.mubr.f32.mxu0 0.0
  %382 = vmatmul.mubr.f32.gmra.mrb[0].mxu0 %v294
  %v383 = vpop.f32.mrb[0].mxu0
  %v384 = vadd.f32 0.0, %v383
  %v385 = vpop.f32.mrb[0].mxu0
  %386 = vmatprep.mubr.f32.mxu0 0.0
  %387 = vmatmul.mubr.f32.gmra.mrb[0].mxu0 %v297
  %v388 = vpop.f32.mrb[0].mxu0
  %v389 = vadd.f32 0.0, %v388
  %v390 = vpop.f32.mrb[0].mxu0
  %391 = vmatprep.mubr.f32.mxu0 0.0
  %392 = vmatmul.mubr.f32.gmra.mrb[0].mxu0 %v300
  %v393 = vpop.f32.mrb[0].mxu0
  %v394 = vadd.f32 0.0, %v393
  %v395 = vpop.f32.mrb[0].mxu0
  %396 = vmatprep.mubr.f32.mxu0 0.0
  %397 = vmatmul.mubr.f32.gmra.mrb[0].mxu0 %v303
  %v398 = vpop.f32.mrb[0].mxu0
  %v399 = vadd.f32 0.0, %v398
  %v400 = vpop.f32.mrb[0].mxu0
  %401 = vmatprep.mubr.f32.mxu0 0.0
  %402 = vmatmul.mubr.f32.gmra.mrb[0].mxu0 %v306
  %v403 = vpop.f32.mrb[0].mxu0
  %v404 = vadd.f32 0.0, %v403
  %v405 = vpop.f32.mrb[0].mxu0
  %406 = vmatprep.mubr.f32.mxu0 0.0
  %407 = vmatmul.mubr.f32.gmra.mrb[0].mxu0 %v309
  %v408 = vpop.f32.mrb[0].mxu0
  %v409 = vadd.f32 0.0, %v408
  %v410 = vpop.f32.mrb[0].mxu0
  %411 = vmatprep.mubr.f32.mxu0 0.0
  %412 = vmatmul.mubr.f32.gmra.mrb[0].mxu0 %v312
  %v413 = vpop.f32.mrb[0].mxu0
  %v414 = vadd.f32 0.0, %v413
  %v415 = vpop.f32.mrb[0].mxu0
  %416 = vmatprep.mubr.f32.mxu0 0.0
  %417 = vmatmul.mubr.f32.gmra.mrb[0].mxu0 %v315
  %v418 = vpop.f32.mrb[0].mxu0
  %v419 = vadd.f32 0.0, %v418
  %v420 = vpop.f32.mrb[0].mxu0
  %421 = vdwg.mxu0
  %v422 = vadd.f32 %v134, %v384
  %v423 = vadd.f32 %v135, %v389
  %v424 = vadd.f32 %v136, %v394
  %v425 = vadd.f32 %v137, %v399
  %v426 = vadd.f32 %v138, %v404
  %v427 = vadd.f32 %v139, %v409
  %v428 = vadd.f32 %v140, %v414
  %v429 = vadd.f32 %v141, %v419
  %s430 = scalar_lea.vmem %s2, 64
  %v431 = vld [vmem:[%s430] sm:$0xff]
  %v432 = vld [vmem:[%s430 + $0x8] sm:$0xff]
  %v433 = vld [vmem:[%s430 + $0x10] sm:$0xff]
  %v434 = vld [vmem:[%s430 + $0x18] sm:$0xff]
  %v435 = vld [vmem:[%s430 + $0x20] sm:$0xff]
  %v436 = vld [vmem:[%s430 + $0x28] sm:$0xff]
  %v437 = vld [vmem:[%s430 + $0x30] sm:$0xff]
  %v438 = vld [vmem:[%s430 + $0x38] sm:$0xf]
  %v440 = vsel %vm150, %v431, 0
  %v443 = vsel %vm150, %v432, 0
  %v446 = vsel %vm150, %v433, 0
  %v449 = vsel %vm150, %v434, 0
  %v452 = vsel %vm150, %v435, 0
  %v455 = vsel %vm150, %v436, 0
  %v458 = vsel %vm150, %v437, 0
  %v461 = vsel %vm150, %v438, 0
  %463 = vmatprep.subr.mxu0 0.0
  %464 = vmatpush1.msra.mxu0 %v116
  %465 = vmatprep.subr.mxu0 0.0
  %466 = vmatpush1.msra.mxu0 %v121
  %467 = vmatprep.subr.mxu0 0.0
  %468 = vmatpush1.msra.mxu0 %v126
  %469 = vmatprep.subr.mxu0 0.0
  %470 = vmatpush1.msra.mxu0 %v177
  %471 = vmatprep.subr.mxu0 0.0
  %472 = vmatpush1.msra.mxu0 0.0
  %473 = vmatprep.subr.mxu0 0.0
  %474 = vmatpush1.msra.mxu0 0.0
  %475 = vmatprep.subr.mxu0 0.0
  %476 = vmatpush1.msra.mxu0 0.0
  %477 = vmatprep.subr.mxu0 0.0
  %478 = vmatpush1.msra.mxu0 0.0
  %479 = vmatprep.subr.mxu0 0.0
  %480 = vmatpush1.msra.mxu0 0.0
  %481 = vmatprep.subr.mxu0 0.0
  %482 = vmatpush1.msra.mxu0 0.0
  %483 = vmatprep.subr.mxu0 0.0
  %484 = vmatpush1.msra.mxu0 0.0
  %485 = vmatprep.subr.mxu0 0.0
  %486 = vmatpush1.msra.mxu0 0.0
  %487 = vmatprep.subr.mxu0 0.0
  %488 = vmatpush1.msra.mxu0 0.0
  %489 = vmatprep.subr.mxu0 0.0
  %490 = vmatpush1.msra.mxu0 0.0
  %491 = vmatprep.subr.mxu0 0.0
  %492 = vmatpush1.msra.mxu0 0.0
  %493 = vmatprep.subr.mxu0 0.0
  %494 = vmatpush1.msra.mxu0 0.0
  %495 = vmatprep.subr.mxu0 0.0
  %496 = vmatpush1.msra.mxu0 0.0
  %497 = vmatprep.subr.mxu0 0.0
  %498 = vmatpush1.msra.mxu0 0.0
  %499 = vmatprep.subr.mxu0 0.0
  %500 = vmatpush1.msra.mxu0 0.0
  %501 = vmatprep.subr.mxu0 0.0
  %502 = vmatpush1.msra.mxu0 0.0
  %503 = vmatprep.subr.mxu0 0.0
  %504 = vmatpush1.msra.mxu0 0.0
  %505 = vmatprep.subr.mxu0 0.0
  %506 = vmatpush1.msra.mxu0 0.0
  %507 = vmatprep.subr.mxu0 0.0
  %508 = vmatpush1.msra.mxu0 0.0
  %509 = vmatprep.subr.mxu0 0.0
  %510 = vmatpush1.msra.mxu0 0.0
  %511 = vmatprep.subr.mxu0 0.0
  %512 = vmatpush1.msra.mxu0 0.0
  %513 = vmatprep.subr.mxu0 0.0
  %514 = vmatpush1.msra.mxu0 0.0
  %515 = vmatprep.subr.mxu0 0.0
  %516 = vmatpush1.msra.mxu0 0.0
  %517 = vmatprep.subr.mxu0 0.0
  %518 = vmatpush1.msra.mxu0 0.0
  %519 = vmatprep.subr.mxu0 0.0
  %520 = vmatpush1.msra.mxu0 0.0
  %521 = vmatprep.subr.mxu0 0.0
  %522 = vmatpush1.msra.mxu0 0.0
  %523 = vmatprep.subr.mxu0 0.0
  %524 = vmatpush1.msra.mxu0 0.0
  %525 = vmatprep.subr.mxu0 0.0
  %526 = vmatpush1.msra.mxu0 0.0
  %527 = vmatprep.mubr.f32.mxu0 0.0
  %528 = vmatmul.mubr.f32.gmra.mrb[0].mxu0 %v440
  %v529 = vpop.f32.mrb[0].mxu0
  %v530 = vadd.f32 0.0, %v529
  %v531 = vpop.f32.mrb[0].mxu0
  %532 = vmatprep.mubr.f32.mxu0 0.0
  %533 = vmatmul.mubr.f32.gmra.mrb[0].mxu0 %v443
  %v534 = vpop.f32.mrb[0].mxu0
  %v535 = vadd.f32 0.0, %v534
  %v536 = vpop.f32.mrb[0].mxu0
  %537 = vmatprep.mubr.f32.mxu0 0.0
  %538 = vmatmul.mubr.f32.gmra.mrb[0].mxu0 %v446
  %v539 = vpop.f32.mrb[0].mxu0
  %v540 = vadd.f32 0.0, %v539
  %v541 = vpop.f32.mrb[0].mxu0
  %542 = vmatprep.mubr.f32.mxu0 0.0
  %543 = vmatmul.mubr.f32.gmra.mrb[0].mxu0 %v449
  %v544 = vpop.f32.mrb[0].mxu0
  %v545 = vadd.f32 0.0, %v544
  %v546 = vpop.f32.mrb[0].mxu0
  %547 = vmatprep.mubr.f32.mxu0 0.0
  %548 = vmatmul.mubr.f32.gmra.mrb[0].mxu0 %v452
  %v549 = vpop.f32.mrb[0].mxu0
  %v550 = vadd.f32 0.0, %v549
  %v551 = vpop.f32.mrb[0].mxu0
  %552 = vmatprep.mubr.f32.mxu0 0.0
  %553 = vmatmul.mubr.f32.gmra.mrb[0].mxu0 %v455
  %v554 = vpop.f32.mrb[0].mxu0
  %v555 = vadd.f32 0.0, %v554
  %v556 = vpop.f32.mrb[0].mxu0
  %557 = vmatprep.mubr.f32.mxu0 0.0
  %558 = vmatmul.mubr.f32.gmra.mrb[0].mxu0 %v458
  %v559 = vpop.f32.mrb[0].mxu0
  %v560 = vadd.f32 0.0, %v559
  %v561 = vpop.f32.mrb[0].mxu0
  %562 = vmatprep.mubr.f32.mxu0 0.0
  %563 = vmatmul.mubr.f32.gmra.mrb[0].mxu0 %v461
  %v564 = vpop.f32.mrb[0].mxu0
  %v565 = vadd.f32 0.0, %v564
  %v566 = vpop.f32.mrb[0].mxu0
  %567 = vdwg.mxu0
  %s568 = scalar_lea.vmem %s3, 64
  %v569 = vld [vmem:[%s568] sm:$0xff]
  %v570 = vld [vmem:[%s568 + $0x8] sm:$0xff]
  %v571 = vld [vmem:[%s568 + $0x10] sm:$0xff]
  %v572 = vld [vmem:[%s568 + $0x18] sm:$0xff]
  %v573 = vld [vmem:[%s568 + $0x20] sm:$0xff]
  %v574 = vld [vmem:[%s568 + $0x28] sm:$0xff]
  %v575 = vld [vmem:[%s568 + $0x30] sm:$0xff]
  %v576 = vld [vmem:[%s568 + $0x38] sm:$0xff]
  %v578 = vsel %vm292, %v530, 0
  %v581 = vsel %vm292, %v535, 0
  %v584 = vsel %vm292, %v540, 0
  %v587 = vsel %vm292, %v545, 0
  %v590 = vsel %vm292, %v550, 0
  %v593 = vsel %vm292, %v555, 0
  %v596 = vsel %vm292, %v560, 0
  %v599 = vsel %vm292, %v565, 0
  %601 = vmatprep.subr.mxu0 0.0
  %602 = vmatpush1.msra.mxu0 %v569
  %603 = vmatprep.subr.mxu0 0.0
  %604 = vmatpush1.msra.mxu0 %v570
  %605 = vmatprep.subr.mxu0 0.0
  %606 = vmatpush1.msra.mxu0 %v571
  %607 = vmatprep.subr.mxu0 0.0
  %608 = vmatpush1.msra.mxu0 %v572
  %609 = vmatprep.subr.mxu0 0.0
  %610 = vmatpush1.msra.mxu0 %v573
  %611 = vmatprep.subr.mxu0 0.0
  %612 = vmatpush1.msra.mxu0 %v574
  %613 = vmatprep.subr.mxu0 0.0
  %614 = vmatpush1.msra.mxu0 %v575
  %615 = vmatprep.subr.mxu0 0.0
  %616 = vmatpush1.msra.mxu0 %v576
  %617 = vmatprep.subr.mxu0 0.0
  %618 = vmatpush1.msra.mxu0 0.0
  %619 = vmatprep.subr.mxu0 0.0
  %620 = vmatpush1.msra.mxu0 0.0
  %621 = vmatprep.subr.mxu0 0.0
  %622 = vmatpush1.msra.mxu0 0.0
  %623 = vmatprep.subr.mxu0 0.0
  %624 = vmatpush1.msra.mxu0 0.0
  %625 = vmatprep.subr.mxu0 0.0
  %626 = vmatpush1.msra.mxu0 0.0
  %627 = vmatprep.subr.mxu0 0.0
  %628 = vmatpush1.msra.mxu0 0.0
  %629 = vmatprep.subr.mxu0 0.0
  %630 = vmatpush1.msra.mxu0 0.0
  %631 = vmatprep.subr.mxu0 0.0
  %632 = vmatpush1.msra.mxu0 0.0
  %633 = vmatprep.subr.mxu0 0.0
  %634 = vmatpush1.msra.mxu0 0.0
  %635 = vmatprep.subr.mxu0 0.0
  %636 = vmatpush1.msra.mxu0 0.0
  %637 = vmatprep.subr.mxu0 0.0
  %638 = vmatpush1.msra.mxu0 0.0
  %639 = vmatprep.subr.mxu0 0.0
  %640 = vmatpush1.msra.mxu0 0.0
  %641 = vmatprep.subr.mxu0 0.0
  %642 = vmatpush1.msra.mxu0 0.0
  %643 = vmatprep.subr.mxu0 0.0
  %644 = vmatpush1.msra.mxu0 0.0
  %645 = vmatprep.subr.mxu0 0.0
  %646 = vmatpush1.msra.mxu0 0.0
  %647 = vmatprep.subr.mxu0 0.0
  %648 = vmatpush1.msra.mxu0 0.0
  %649 = vmatprep.subr.mxu0 0.0
  %650 = vmatpush1.msra.mxu0 0.0
  %651 = vmatprep.subr.mxu0 0.0
  %652 = vmatpush1.msra.mxu0 0.0
  %653 = vmatprep.subr.mxu0 0.0
  %654 = vmatpush1.msra.mxu0 0.0
  %655 = vmatprep.subr.mxu0 0.0
  %656 = vmatpush1.msra.mxu0 0.0
  %657 = vmatprep.subr.mxu0 0.0
  %658 = vmatpush1.msra.mxu0 0.0
  %659 = vmatprep.subr.mxu0 0.0
  %660 = vmatpush1.msra.mxu0 0.0
  %661 = vmatprep.subr.mxu0 0.0
  %662 = vmatpush1.msra.mxu0 0.0
  %663 = vmatprep.subr.mxu0 0.0
  %664 = vmatpush1.msra.mxu0 0.0
  %665 = vmatprep.mubr.f32.mxu0 0.0
  %666 = vmatmul.mubr.f32.gmra.mrb[0].mxu0 %v578
  %v667 = vpop.f32.mrb[0].mxu0
  %v668 = vadd.f32 0.0, %v667
  %v669 = vpop.f32.mrb[0].mxu0
  %670 = vmatprep.mubr.f32.mxu0 0.0
  %671 = vmatmul.mubr.f32.gmra.mrb[0].mxu0 %v581
  %v672 = vpop.f32.mrb[0].mxu0
  %v673 = vadd.f32 0.0, %v672
  %v674 = vpop.f32.mrb[0].mxu0
  %675 = vmatprep.mubr.f32.mxu0 0.0
  %676 = vmatmul.mubr.f32.gmra.mrb[0].mxu0 %v584
  %v677 = vpop.f32.mrb[0].mxu0
  %v678 = vadd.f32 0.0, %v677
  %v679 = vpop.f32.mrb[0].mxu0
  %680 = vmatprep.mubr.f32.mxu0 0.0
  %681 = vmatmul.mubr.f32.gmra.mrb[0].mxu0 %v587
  %v682 = vpop.f32.mrb[0].mxu0
  %v683 = vadd.f32 0.0, %v682
  %v684 = vpop.f32.mrb[0].mxu0
  %685 = vmatprep.mubr.f32.mxu0 0.0
  %686 = vmatmul.mubr.f32.gmra.mrb[0].mxu0 %v590
  %v687 = vpop.f32.mrb[0].mxu0
  %v688 = vadd.f32 0.0, %v687
  %v689 = vpop.f32.mrb[0].mxu0
  %690 = vmatprep.mubr.f32.mxu0 0.0
  %691 = vmatmul.mubr.f32.gmra.mrb[0].mxu0 %v593
  %v692 = vpop.f32.mrb[0].mxu0
  %v693 = vadd.f32 0.0, %v692
  %v694 = vpop.f32.mrb[0].mxu0
  %695 = vmatprep.mubr.f32.mxu0 0.0
  %696 = vmatmul.mubr.f32.gmra.mrb[0].mxu0 %v596
  %v697 = vpop.f32.mrb[0].mxu0
  %v698 = vadd.f32 0.0, %v697
  %v699 = vpop.f32.mrb[0].mxu0
  %700 = vmatprep.mubr.f32.mxu0 0.0
  %701 = vmatmul.mubr.f32.gmra.mrb[0].mxu0 %v599
  %v702 = vpop.f32.mrb[0].mxu0
  %v703 = vadd.f32 0.0, %v702
  %v704 = vpop.f32.mrb[0].mxu0
  %705 = vdwg.mxu0
  %v706 = vadd.f32 %v422, %v668
  %v707 = vadd.f32 %v423, %v673
  %v708 = vadd.f32 %v424, %v678
  %v709 = vadd.f32 %v425, %v683
  %v710 = vadd.f32 %v426, %v688
  %v711 = vadd.f32 %v427, %v693
  %v712 = vadd.f32 %v428, %v698
  %v713 = vadd.f32 %v429, %v703
  %s714 = scalar_lea.vmem %s2, 128
  %v715 = vld [vmem:[%s714] sm:$0xff]
  %v716 = vld [vmem:[%s714 + $0x8] sm:$0xff]
  %v717 = vld [vmem:[%s714 + $0x10] sm:$0xff]
  %v718 = vld [vmem:[%s714 + $0x18] sm:$0xff]
  %v719 = vld [vmem:[%s714 + $0x20] sm:$0xff]
  %v720 = vld [vmem:[%s714 + $0x28] sm:$0xff]
  %v721 = vld [vmem:[%s714 + $0x30] sm:$0xff]
  %v722 = vld [vmem:[%s714 + $0x38] sm:$0xf]
  %v724 = vsel %vm150, %v715, 0
  %v727 = vsel %vm150, %v716, 0
  %v730 = vsel %vm150, %v717, 0
  %v733 = vsel %vm150, %v718, 0
  %v736 = vsel %vm150, %v719, 0
  %v739 = vsel %vm150, %v720, 0
  %v742 = vsel %vm150, %v721, 0
  %v745 = vsel %vm150, %v722, 0
  %747 = vmatprep.subr.mxu0 0.0
  %748 = vmatpush1.msra.mxu0 %v116
  %749 = vmatprep.subr.mxu0 0.0
  %750 = vmatpush1.msra.mxu0 %v121
  %751 = vmatprep.subr.mxu0 0.0
  %752 = vmatpush1.msra.mxu0 %v126
  %753 = vmatprep.subr.mxu0 0.0
  %754 = vmatpush1.msra.mxu0 %v177
  %755 = vmatprep.subr.mxu0 0.0
  %756 = vmatpush1.msra.mxu0 0.0
  %757 = vmatprep.subr.mxu0 0.0
  %758 = vmatpush1.msra.mxu0 0.0
  %759 = vmatprep.subr.mxu0 0.0
  %760 = vmatpush1.msra.mxu0 0.0
  %761 = vmatprep.subr.mxu0 0.0
  %762 = vmatpush1.msra.mxu0 0.0
  %763 = vmatprep.subr.mxu0 0.0
  %764 = vmatpush1.msra.mxu0 0.0
  %765 = vmatprep.subr.mxu0 0.0
  %766 = vmatpush1.msra.mxu0 0.0
  %767 = vmatprep.subr.mxu0 0.0
  %768 = vmatpush1.msra.mxu0 0.0
  %769 = vmatprep.subr.mxu0 0.0
  %770 = vmatpush1.msra.mxu0 0.0
  %771 = vmatprep.subr.mxu0 0.0
  %772 = vmatpush1.msra.mxu0 0.0
  %773 = vmatprep.subr.mxu0 0.0
  %774 = vmatpush1.msra.mxu0 0.0
  %775 = vmatprep.subr.mxu0 0.0
  %776 = vmatpush1.msra.mxu0 0.0
  %777 = vmatprep.subr.mxu0 0.0
  %778 = vmatpush1.msra.mxu0 0.0
  %779 = vmatprep.subr.mxu0 0.0
  %780 = vmatpush1.msra.mxu0 0.0
  %781 = vmatprep.subr.mxu0 0.0
  %782 = vmatpush1.msra.mxu0 0.0
  %783 = vmatprep.subr.mxu0 0.0
  %784 = vmatpush1.msra.mxu0 0.0
  %785 = vmatprep.subr.mxu0 0.0
  %786 = vmatpush1.msra.mxu0 0.0
  %787 = vmatprep.subr.mxu0 0.0
  %788 = vmatpush1.msra.mxu0 0.0
  %789 = vmatprep.subr.mxu0 0.0
  %790 = vmatpush1.msra.mxu0 0.0
  %791 = vmatprep.subr.mxu0 0.0
  %792 = vmatpush1.msra.mxu0 0.0
  %793 = vmatprep.subr.mxu0 0.0
  %794 = vmatpush1.msra.mxu0 0.0
  %795 = vmatprep.subr.mxu0 0.0
  %796 = vmatpush1.msra.mxu0 0.0
  %797 = vmatprep.subr.mxu0 0.0
  %798 = vmatpush1.msra.mxu0 0.0
  %799 = vmatprep.subr.mxu0 0.0
  %800 = vmatpush1.msra.mxu0 0.0
  %801 = vmatprep.subr.mxu0 0.0
  %802 = vmatpush1.msra.mxu0 0.0
  %803 = vmatprep.subr.mxu0 0.0
  %804 = vmatpush1.msra.mxu0 0.0
  %805 = vmatprep.subr.mxu0 0.0
  %806 = vmatpush1.msra.mxu0 0.0
  %807 = vmatprep.subr.mxu0 0.0
  %808 = vmatpush1.msra.mxu0 0.0
  %809 = vmatprep.subr.mxu0 0.0
  %810 = vmatpush1.msra.mxu0 0.0
  %811 = vmatprep.mubr.f32.mxu0 0.0
  %812 = vmatmul.mubr.f32.gmra.mrb[0].mxu0 %v724
  %v813 = vpop.f32.mrb[0].mxu0
  %v814 = vadd.f32 0.0, %v813
  %v815 = vpop.f32.mrb[0].mxu0
  %816 = vmatprep.mubr.f32.mxu0 0.0
  %817 = vmatmul.mubr.f32.gmra.mrb[0].mxu0 %v727
  %v818 = vpop.f32.mrb[0].mxu0
  %v819 = vadd.f32 0.0, %v818
  %v820 = vpop.f32.mrb[0].mxu0
  %821 = vmatprep.mubr.f32.mxu0 0.0
  %822 = vmatmul.mubr.f32.gmra.mrb[0].mxu0 %v730
  %v823 = vpop.f32.mrb[0].mxu0
  %v824 = vadd.f32 0.0, %v823
  %v825 = vpop.f32.mrb[0].mxu0
  %826 = vmatprep.mubr.f32.mxu0 0.0
  %827 = vmatmul.mubr.f32.gmra.mrb[0].mxu0 %v733
  %v828 = vpop.f32.mrb[0].mxu0
  %v829 = vadd.f32 0.0, %v828
  %v830 = vpop.f32.mrb[0].mxu0
  %831 = vmatprep.mubr.f32.mxu0 0.0
  %832 = vmatmul.mubr.f32.gmra.mrb[0].mxu0 %v736
  %v833 = vpop.f32.mrb[0].mxu0
  %v834 = vadd.f32 0.0, %v833
  %v835 = vpop.f32.mrb[0].mxu0
  %836 = vmatprep.mubr.f32.mxu0 0.0
  %837 = vmatmul.mubr.f32.gmra.mrb[0].mxu0 %v739
  %v838 = vpop.f32.mrb[0].mxu0
  %v839 = vadd.f32 0.0, %v838
  %v840 = vpop.f32.mrb[0].mxu0
  %841 = vmatprep.mubr.f32.mxu0 0.0
  %842 = vmatmul.mubr.f32.gmra.mrb[0].mxu0 %v742
  %v843 = vpop.f32.mrb[0].mxu0
  %v844 = vadd.f32 0.0, %v843
  %v845 = vpop.f32.mrb[0].mxu0
  %846 = vmatprep.mubr.f32.mxu0 0.0
  %847 = vmatmul.mubr.f32.gmra.mrb[0].mxu0 %v745
  %v848 = vpop.f32.mrb[0].mxu0
  %v849 = vadd.f32 0.0, %v848
  %v850 = vpop.f32.mrb[0].mxu0
  %851 = vdwg.mxu0
  %s852 = scalar_lea.vmem %s3, 128
  %v853 = vld [vmem:[%s852] sm:$0xff]
  %v854 = vld [vmem:[%s852 + $0x8] sm:$0xff]
  %v855 = vld [vmem:[%s852 + $0x10] sm:$0xff]
  %v856 = vld [vmem:[%s852 + $0x18] sm:$0xff]
  %v857 = vld [vmem:[%s852 + $0x20] sm:$0xff]
  %v858 = vld [vmem:[%s852 + $0x28] sm:$0xff]
  %v859 = vld [vmem:[%s852 + $0x30] sm:$0xff]
  %v860 = vld [vmem:[%s852 + $0x38] sm:$0xff]
  %v862 = vsel %vm292, %v814, 0
  %v865 = vsel %vm292, %v819, 0
  %v868 = vsel %vm292, %v824, 0
  %v871 = vsel %vm292, %v829, 0
  %v874 = vsel %vm292, %v834, 0
  %v877 = vsel %vm292, %v839, 0
  %v880 = vsel %vm292, %v844, 0
  %v883 = vsel %vm292, %v849, 0
  %885 = vmatprep.subr.mxu0 0.0
  %886 = vmatpush1.msra.mxu0 %v853
  %887 = vmatprep.subr.mxu0 0.0
  %888 = vmatpush1.msra.mxu0 %v854
  %889 = vmatprep.subr.mxu0 0.0
  %890 = vmatpush1.msra.mxu0 %v855
  %891 = vmatprep.subr.mxu0 0.0
  %892 = vmatpush1.msra.mxu0 %v856
  %893 = vmatprep.subr.mxu0 0.0
  %894 = vmatpush1.msra.mxu0 %v857
  %895 = vmatprep.subr.mxu0 0.0
  %896 = vmatpush1.msra.mxu0 %v858
  %897 = vmatprep.subr.mxu0 0.0
  %898 = vmatpush1.msra.mxu0 %v859
  %899 = vmatprep.subr.mxu0 0.0
  %900 = vmatpush1.msra.mxu0 %v860
  %901 = vmatprep.subr.mxu0 0.0
  %902 = vmatpush1.msra.mxu0 0.0
  %903 = vmatprep.subr.mxu0 0.0
  %904 = vmatpush1.msra.mxu0 0.0
  %905 = vmatprep.subr.mxu0 0.0
  %906 = vmatpush1.msra.mxu0 0.0
  %907 = vmatprep.subr.mxu0 0.0
  %908 = vmatpush1.msra.mxu0 0.0
  %909 = vmatprep.subr.mxu0 0.0
  %910 = vmatpush1.msra.mxu0 0.0
  %911 = vmatprep.subr.mxu0 0.0
  %912 = vmatpush1.msra.mxu0 0.0
  %913 = vmatprep.subr.mxu0 0.0
  %914 = vmatpush1.msra.mxu0 0.0
  %915 = vmatprep.subr.mxu0 0.0
  %916 = vmatpush1.msra.mxu0 0.0
  %917 = vmatprep.subr.mxu0 0.0
  %918 = vmatpush1.msra.mxu0 0.0
  %919 = vmatprep.subr.mxu0 0.0
  %920 = vmatpush1.msra.mxu0 0.0
  %921 = vmatprep.subr.mxu0 0.0
  %922 = vmatpush1.msra.mxu0 0.0
  %923 = vmatprep.subr.mxu0 0.0
  %924 = vmatpush1.msra.mxu0 0.0
  %925 = vmatprep.subr.mxu0 0.0
  %926 = vmatpush1.msra.mxu0 0.0
  %927 = vmatprep.subr.mxu0 0.0
  %928 = vmatpush1.msra.mxu0 0.0
  %929 = vmatprep.subr.mxu0 0.0
  %930 = vmatpush1.msra.mxu0 0.0
  %931 = vmatprep.subr.mxu0 0.0
  %932 = vmatpush1.msra.mxu0 0.0
  %933 = vmatprep.subr.mxu0 0.0
  %934 = vmatpush1.msra.mxu0 0.0
  %935 = vmatprep.subr.mxu0 0.0
  %936 = vmatpush1.msra.mxu0 0.0
  %937 = vmatprep.subr.mxu0 0.0
  %938 = vmatpush1.msra.mxu0 0.0
  %939 = vmatprep.subr.mxu0 0.0
  %940 = vmatpush1.msra.mxu0 0.0
  %941 = vmatprep.subr.mxu0 0.0
  %942 = vmatpush1.msra.mxu0 0.0
  %943 = vmatprep.subr.mxu0 0.0
  %944 = vmatpush1.msra.mxu0 0.0
  %945 = vmatprep.subr.mxu0 0.0
  %946 = vmatpush1.msra.mxu0 0.0
  %947 = vmatprep.subr.mxu0 0.0
  %948 = vmatpush1.msra.mxu0 0.0
  %949 = vmatprep.mubr.f32.mxu0 0.0
  %950 = vmatmul.mubr.f32.gmra.mrb[0].mxu0 %v862
  %v951 = vpop.f32.mrb[0].mxu0
  %v952 = vadd.f32 0.0, %v951
  %v953 = vpop.f32.mrb[0].mxu0
  %954 = vmatprep.mubr.f32.mxu0 0.0
  %955 = vmatmul.mubr.f32.gmra.mrb[0].mxu0 %v865
  %v956 = vpop.f32.mrb[0].mxu0
  %v957 = vadd.f32 0.0, %v956
  %v958 = vpop.f32.mrb[0].mxu0
  %959 = vmatprep.mubr.f32.mxu0 0.0
  %960 = vmatmul.mubr.f32.gmra.mrb[0].mxu0 %v868
  %v961 = vpop.f32.mrb[0].mxu0
  %v962 = vadd.f32 0.0, %v961
  %v963 = vpop.f32.mrb[0].mxu0
  %964 = vmatprep.mubr.f32.mxu0 0.0
  %965 = vmatmul.mubr.f32.gmra.mrb[0].mxu0 %v871
  %v966 = vpop.f32.mrb[0].mxu0
  %v967 = vadd.f32 0.0, %v966
  %v968 = vpop.f32.mrb[0].mxu0
  %969 = vmatprep.mubr.f32.mxu0 0.0
  %970 = vmatmul.mubr.f32.gmra.mrb[0].mxu0 %v874
  %v971 = vpop.f32.mrb[0].mxu0
  %v972 = vadd.f32 0.0, %v971
  %v973 = vpop.f32.mrb[0].mxu0
  %974 = vmatprep.mubr.f32.mxu0 0.0
  %975 = vmatmul.mubr.f32.gmra.mrb[0].mxu0 %v877
  %v976 = vpop.f32.mrb[0].mxu0
  %v977 = vadd.f32 0.0, %v976
  %v978 = vpop.f32.mrb[0].mxu0
  %979 = vmatprep.mubr.f32.mxu0 0.0
  %980 = vmatmul.mubr.f32.gmra.mrb[0].mxu0 %v880
  %v981 = vpop.f32.mrb[0].mxu0
  %v982 = vadd.f32 0.0, %v981
  %v983 = vpop.f32.mrb[0].mxu0
  %984 = vmatprep.mubr.f32.mxu0 0.0
  %985 = vmatmul.mubr.f32.gmra.mrb[0].mxu0 %v883
  %v986 = vpop.f32.mrb[0].mxu0
  %v987 = vadd.f32 0.0, %v986
  %v988 = vpop.f32.mrb[0].mxu0
  %989 = vdwg.mxu0
  %v990 = vadd.f32 %v706, %v952
  %v991 = vadd.f32 %v707, %v957
  %v992 = vadd.f32 %v708, %v962
  %v993 = vadd.f32 %v709, %v967
  %v994 = vadd.f32 %v710, %v972
  %v995 = vadd.f32 %v711, %v977
  %v996 = vadd.f32 %v712, %v982
  %v997 = vadd.f32 %v713, %v987
  %s998 = scalar_lea.vmem %s2, 192
  %v999 = vld [vmem:[%s998] sm:$0xff]
  %v1000 = vld [vmem:[%s998 + $0x8] sm:$0xff]
  %v1001 = vld [vmem:[%s998 + $0x10] sm:$0xff]
  %v1002 = vld [vmem:[%s998 + $0x18] sm:$0xff]
  %v1003 = vld [vmem:[%s998 + $0x20] sm:$0xff]
  %v1004 = vld [vmem:[%s998 + $0x28] sm:$0xff]
  %v1005 = vld [vmem:[%s998 + $0x30] sm:$0xff]
  %v1006 = vld [vmem:[%s998 + $0x38] sm:$0xf]
  %v1008 = vsel %vm150, %v999, 0
  %v1011 = vsel %vm150, %v1000, 0
  %v1014 = vsel %vm150, %v1001, 0
  %v1017 = vsel %vm150, %v1002, 0
  %v1020 = vsel %vm150, %v1003, 0
  %v1023 = vsel %vm150, %v1004, 0
  %v1026 = vsel %vm150, %v1005, 0
  %v1029 = vsel %vm150, %v1006, 0
  %1031 = vmatprep.subr.mxu0 0.0
  %1032 = vmatpush1.msra.mxu0 %v116
  %1033 = vmatprep.subr.mxu0 0.0
  %1034 = vmatpush1.msra.mxu0 %v121
  %1035 = vmatprep.subr.mxu0 0.0
  %1036 = vmatpush1.msra.mxu0 %v126
  %1037 = vmatprep.subr.mxu0 0.0
  %1038 = vmatpush1.msra.mxu0 %v177
  %1039 = vmatprep.subr.mxu0 0.0
  %1040 = vmatpush1.msra.mxu0 0.0
  %1041 = vmatprep.subr.mxu0 0.0
  %1042 = vmatpush1.msra.mxu0 0.0
  %1043 = vmatprep.subr.mxu0 0.0
  %1044 = vmatpush1.msra.mxu0 0.0
  %1045 = vmatprep.subr.mxu0 0.0
  %1046 = vmatpush1.msra.mxu0 0.0
  %1047 = vmatprep.subr.mxu0 0.0
  %1048 = vmatpush1.msra.mxu0 0.0
  %1049 = vmatprep.subr.mxu0 0.0
  %1050 = vmatpush1.msra.mxu0 0.0
  %1051 = vmatprep.subr.mxu0 0.0
  %1052 = vmatpush1.msra.mxu0 0.0
  %1053 = vmatprep.subr.mxu0 0.0
  %1054 = vmatpush1.msra.mxu0 0.0
  %1055 = vmatprep.subr.mxu0 0.0
  %1056 = vmatpush1.msra.mxu0 0.0
  %1057 = vmatprep.subr.mxu0 0.0
  %1058 = vmatpush1.msra.mxu0 0.0
  %1059 = vmatprep.subr.mxu0 0.0
  %1060 = vmatpush1.msra.mxu0 0.0
  %1061 = vmatprep.subr.mxu0 0.0
  %1062 = vmatpush1.msra.mxu0 0.0
  %1063 = vmatprep.subr.mxu0 0.0
  %1064 = vmatpush1.msra.mxu0 0.0
  %1065 = vmatprep.subr.mxu0 0.0
  %1066 = vmatpush1.msra.mxu0 0.0
  %1067 = vmatprep.subr.mxu0 0.0
  %1068 = vmatpush1.msra.mxu0 0.0
  %1069 = vmatprep.subr.mxu0 0.0
  %1070 = vmatpush1.msra.mxu0 0.0
  %1071 = vmatprep.subr.mxu0 0.0
  %1072 = vmatpush1.msra.mxu0 0.0
  %1073 = vmatprep.subr.mxu0 0.0
  %1074 = vmatpush1.msra.mxu0 0.0
  %1075 = vmatprep.subr.mxu0 0.0
  %1076 = vmatpush1.msra.mxu0 0.0
  %1077 = vmatprep.subr.mxu0 0.0
  %1078 = vmatpush1.msra.mxu0 0.0
  %1079 = vmatprep.subr.mxu0 0.0
  %1080 = vmatpush1.msra.mxu0 0.0
  %1081 = vmatprep.subr.mxu0 0.0
  %1082 = vmatpush1.msra.mxu0 0.0
  %1083 = vmatprep.subr.mxu0 0.0
  %1084 = vmatpush1.msra.mxu0 0.0
  %1085 = vmatprep.subr.mxu0 0.0
  %1086 = vmatpush1.msra.mxu0 0.0
  %1087 = vmatprep.subr.mxu0 0.0
  %1088 = vmatpush1.msra.mxu0 0.0
  %1089 = vmatprep.subr.mxu0 0.0
  %1090 = vmatpush1.msra.mxu0 0.0
  %1091 = vmatprep.subr.mxu0 0.0
  %1092 = vmatpush1.msra.mxu0 0.0
  %1093 = vmatprep.subr.mxu0 0.0
  %1094 = vmatpush1.msra.mxu0 0.0
  %1095 = vmatprep.mubr.f32.mxu0 0.0
  %1096 = vmatmul.mubr.f32.gmra.mrb[0].mxu0 %v1008
  %v1097 = vpop.f32.mrb[0].mxu0
  %v1098 = vadd.f32 0.0, %v1097
  %v1099 = vpop.f32.mrb[0].mxu0
  %1100 = vmatprep.mubr.f32.mxu0 0.0
  %1101 = vmatmul.mubr.f32.gmra.mrb[0].mxu0 %v1011
  %v1102 = vpop.f32.mrb[0].mxu0
  %v1103 = vadd.f32 0.0, %v1102
  %v1104 = vpop.f32.mrb[0].mxu0
  %1105 = vmatprep.mubr.f32.mxu0 0.0
  %1106 = vmatmul.mubr.f32.gmra.mrb[0].mxu0 %v1014
  %v1107 = vpop.f32.mrb[0].mxu0
  %v1108 = vadd.f32 0.0, %v1107
  %v1109 = vpop.f32.mrb[0].mxu0
  %1110 = vmatprep.mubr.f32.mxu0 0.0
  %1111 = vmatmul.mubr.f32.gmra.mrb[0].mxu0 %v1017
  %v1112 = vpop.f32.mrb[0].mxu0
  %v1113 = vadd.f32 0.0, %v1112
  %v1114 = vpop.f32.mrb[0].mxu0
  %1115 = vmatprep.mubr.f32.mxu0 0.0
  %1116 = vmatmul.mubr.f32.gmra.mrb[0].mxu0 %v1020
  %v1117 = vpop.f32.mrb[0].mxu0
  %v1118 = vadd.f32 0.0, %v1117
  %v1119 = vpop.f32.mrb[0].mxu0
  %1120 = vmatprep.mubr.f32.mxu0 0.0
  %1121 = vmatmul.mubr.f32.gmra.mrb[0].mxu0 %v1023
  %v1122 = vpop.f32.mrb[0].mxu0
  %v1123 = vadd.f32 0.0, %v1122
  %v1124 = vpop.f32.mrb[0].mxu0
  %1125 = vmatprep.mubr.f32.mxu0 0.0
  %1126 = vmatmul.mubr.f32.gmra.mrb[0].mxu0 %v1026
  %v1127 = vpop.f32.mrb[0].mxu0
  %v1128 = vadd.f32 0.0, %v1127
  %v1129 = vpop.f32.mrb[0].mxu0
  %1130 = vmatprep.mubr.f32.mxu0 0.0
  %1131 = vmatmul.mubr.f32.gmra.mrb[0].mxu0 %v1029
  %v1132 = vpop.f32.mrb[0].mxu0
  %v1133 = vadd.f32 0.0, %v1132
  %v1134 = vpop.f32.mrb[0].mxu0
  %1135 = vdwg.mxu0
  %s1136 = scalar_lea.vmem %s3, 192
  %v1137 = vld [vmem:[%s1136] sm:$0xff]
  %v1138 = vld [vmem:[%s1136 + $0x8] sm:$0xff]
  %v1139 = vld [vmem:[%s1136 + $0x10] sm:$0xff]
  %v1140 = vld [vmem:[%s1136 + $0x18] sm:$0xff]
  %v1141 = vld [vmem:[%s1136 + $0x20] sm:$0xff]
  %v1142 = vld [vmem:[%s1136 + $0x28] sm:$0xff]
  %v1143 = vld [vmem:[%s1136 + $0x30] sm:$0xff]
  %v1144 = vld [vmem:[%s1136 + $0x38] sm:$0xff]
  %v1146 = vsel %vm292, %v1098, 0
  %v1149 = vsel %vm292, %v1103, 0
  %v1152 = vsel %vm292, %v1108, 0
  %v1155 = vsel %vm292, %v1113, 0
  %v1158 = vsel %vm292, %v1118, 0
  %v1161 = vsel %vm292, %v1123, 0
  %v1164 = vsel %vm292, %v1128, 0
  %v1167 = vsel %vm292, %v1133, 0
  %1169 = vmatprep.subr.mxu0 0.0
  %1170 = vmatpush1.msra.mxu0 %v1137
  %1171 = vmatprep.subr.mxu0 0.0
  %1172 = vmatpush1.msra.mxu0 %v1138
  %1173 = vmatprep.subr.mxu0 0.0
  %1174 = vmatpush1.msra.mxu0 %v1139
  %1175 = vmatprep.subr.mxu0 0.0
  %1176 = vmatpush1.msra.mxu0 %v1140
  %1177 = vmatprep.subr.mxu0 0.0
  %1178 = vmatpush1.msra.mxu0 %v1141
  %1179 = vmatprep.subr.mxu0 0.0
  %1180 = vmatpush1.msra.mxu0 %v1142
  %1181 = vmatprep.subr.mxu0 0.0
  %1182 = vmatpush1.msra.mxu0 %v1143
  %1183 = vmatprep.subr.mxu0 0.0
  %1184 = vmatpush1.msra.mxu0 %v1144
  %1185 = vmatprep.subr.mxu0 0.0
  %1186 = vmatpush1.msra.mxu0 0.0
  %1187 = vmatprep.subr.mxu0 0.0
  %1188 = vmatpush1.msra.mxu0 0.0
  %1189 = vmatprep.subr.mxu0 0.0
  %1190 = vmatpush1.msra.mxu0 0.0
  %1191 = vmatprep.subr.mxu0 0.0
  %1192 = vmatpush1.msra.mxu0 0.0
  %1193 = vmatprep.subr.mxu0 0.0
  %1194 = vmatpush1.msra.mxu0 0.0
  %1195 = vmatprep.subr.mxu0 0.0
  %1196 = vmatpush1.msra.mxu0 0.0
  %1197 = vmatprep.subr.mxu0 0.0
  %1198 = vmatpush1.msra.mxu0 0.0
  %1199 = vmatprep.subr.mxu0 0.0
  %1200 = vmatpush1.msra.mxu0 0.0
  %1201 = vmatprep.subr.mxu0 0.0
  %1202 = vmatpush1.msra.mxu0 0.0
  %1203 = vmatprep.subr.mxu0 0.0
  %1204 = vmatpush1.msra.mxu0 0.0
  %1205 = vmatprep.subr.mxu0 0.0
  %1206 = vmatpush1.msra.mxu0 0.0
  %1207 = vmatprep.subr.mxu0 0.0
  %1208 = vmatpush1.msra.mxu0 0.0
  %1209 = vmatprep.subr.mxu0 0.0
  %1210 = vmatpush1.msra.mxu0 0.0
  %1211 = vmatprep.subr.mxu0 0.0
  %1212 = vmatpush1.msra.mxu0 0.0
  %1213 = vmatprep.subr.mxu0 0.0
  %1214 = vmatpush1.msra.mxu0 0.0
  %1215 = vmatprep.subr.mxu0 0.0
  %1216 = vmatpush1.msra.mxu0 0.0
  %1217 = vmatprep.subr.mxu0 0.0
  %1218 = vmatpush1.msra.mxu0 0.0
  %1219 = vmatprep.subr.mxu0 0.0
  %1220 = vmatpush1.msra.mxu0 0.0
  %1221 = vmatprep.subr.mxu0 0.0
  %1222 = vmatpush1.msra.mxu0 0.0
  %1223 = vmatprep.subr.mxu0 0.0
  %1224 = vmatpush1.msra.mxu0 0.0
  %1225 = vmatprep.subr.mxu0 0.0
  %1226 = vmatpush1.msra.mxu0 0.0
  %1227 = vmatprep.subr.mxu0 0.0
  %1228 = vmatpush1.msra.mxu0 0.0
  %1229 = vmatprep.subr.mxu0 0.0
  %1230 = vmatpush1.msra.mxu0 0.0
  %1231 = vmatprep.subr.mxu0 0.0
  %1232 = vmatpush1.msra.mxu0 0.0
  %1233 = vmatprep.mubr.f32.mxu0 0.0
  %1234 = vmatmul.mubr.f32.gmra.mrb[0].mxu0 %v1146
  %v1235 = vpop.f32.mrb[0].mxu0
  %v1236 = vadd.f32 0.0, %v1235
  %v1237 = vpop.f32.mrb[0].mxu0
  %1238 = vmatprep.mubr.f32.mxu0 0.0
  %1239 = vmatmul.mubr.f32.gmra.mrb[0].mxu0 %v1149
  %v1240 = vpop.f32.mrb[0].mxu0
  %v1241 = vadd.f32 0.0, %v1240
  %v1242 = vpop.f32.mrb[0].mxu0
  %1243 = vmatprep.mubr.f32.mxu0 0.0
  %1244 = vmatmul.mubr.f32.gmra.mrb[0].mxu0 %v1152
  %v1245 = vpop.f32.mrb[0].mxu0
  %v1246 = vadd.f32 0.0, %v1245
  %v1247 = vpop.f32.mrb[0].mxu0
  %1248 = vmatprep.mubr.f32.mxu0 0.0
  %1249 = vmatmul.mubr.f32.gmra.mrb[0].mxu0 %v1155
  %v1250 = vpop.f32.mrb[0].mxu0
  %v1251 = vadd.f32 0.0, %v1250
  %v1252 = vpop.f32.mrb[0].mxu0
  %1253 = vmatprep.mubr.f32.mxu0 0.0
  %1254 = vmatmul.mubr.f32.gmra.mrb[0].mxu0 %v1158
  %v1255 = vpop.f32.mrb[0].mxu0
  %v1256 = vadd.f32 0.0, %v1255
  %v1257 = vpop.f32.mrb[0].mxu0
  %1258 = vmatprep.mubr.f32.mxu0 0.0
  %1259 = vmatmul.mubr.f32.gmra.mrb[0].mxu0 %v1161
  %v1260 = vpop.f32.mrb[0].mxu0
  %v1261 = vadd.f32 0.0, %v1260
  %v1262 = vpop.f32.mrb[0].mxu0
  %1263 = vmatprep.mubr.f32.mxu0 0.0
  %1264 = vmatmul.mubr.f32.gmra.mrb[0].mxu0 %v1164
  %v1265 = vpop.f32.mrb[0].mxu0
  %v1266 = vadd.f32 0.0, %v1265
  %v1267 = vpop.f32.mrb[0].mxu0
  %1268 = vmatprep.mubr.f32.mxu0 0.0
  %1269 = vmatmul.mubr.f32.gmra.mrb[0].mxu0 %v1167
  %v1270 = vpop.f32.mrb[0].mxu0
  %v1271 = vadd.f32 0.0, %v1270
  %v1272 = vpop.f32.mrb[0].mxu0
  %1273 = vdwg.mxu0
  %v1274 = vadd.f32 %v990, %v1236
  %v1275 = vadd.f32 %v991, %v1241
  %v1276 = vadd.f32 %v992, %v1246
  %v1277 = vadd.f32 %v993, %v1251
  %v1278 = vadd.f32 %v994, %v1256
  %v1279 = vadd.f32 %v995, %v1261
  %v1280 = vadd.f32 %v996, %v1266
  %v1281 = vadd.f32 %v997, %v1271
  %v1282 = vmax.f32 %v1274, -0.1
  %v1283 = vmax.f32 %v1275, -0.1
  %v1284 = vmax.f32 %v1276, -0.1
  %v1285 = vmax.f32 %v1277, -0.1
  %v1286 = vmax.f32 %v1278, -0.1
  %v1287 = vmax.f32 %v1279, -0.1
  %v1288 = vmax.f32 %v1280, -0.1
  %v1289 = vmax.f32 %v1281, -0.1
  %v1290 = vmin.f32 %v1282, 0.6
  %v1291 = vmin.f32 %v1283, 0.6
  %v1292 = vmin.f32 %v1284, 0.6
  %v1293 = vmin.f32 %v1285, 0.6
  %v1294 = vmin.f32 %v1286, 0.6
  %v1295 = vmin.f32 %v1287, 0.6
  %v1296 = vmin.f32 %v1288, 0.6
  %v1297 = vmin.f32 %v1289, 0.6
  %vm1298 = vcmask 7168
  %1299 = vst.msk [vmem:[%s5] sm:$0xff] %vm1298, %v1290
  %1300 = vst.msk [vmem:[%s5 + $0x8] sm:$0xff] %vm1298, %v1291
  %1301 = vst.msk [vmem:[%s5 + $0x10] sm:$0xff] %vm1298, %v1292
  %1302 = vst.msk [vmem:[%s5 + $0x18] sm:$0xff] %vm1298, %v1293
  %1303 = vst.msk [vmem:[%s5 + $0x20] sm:$0xff] %vm1298, %v1294
  %1304 = vst.msk [vmem:[%s5 + $0x28] sm:$0xff] %vm1298, %v1295
  %1305 = vst.msk [vmem:[%s5 + $0x30] sm:$0xff] %vm1298, %v1296
  %vm1306 = vcmask 3072
  %1307 = vst.msk [vmem:[%s5 + $0x38] sm:$0xf] %vm1306, %v1297
  // Predicated region
  $region22: #{run_model.1} parent=0 // pred_check
    _
  $region23: #{run_model.1} parent=0 // pred_check_branch
    %1309 = sbr.rel (0) target = $region25
  $region24: #{run_model.1} parent=0 // pred_region
    _
  $region25: #{run_model.1} parent=0 // pred_fallthru
    _
  // Predicated region
  $region26: #{run_model.1} parent=0 // pred_check
    _
  $region27: #{run_model.1} parent=0 // pred_check_branch
    %1311 = sbr.rel (0) target = $region29
  $region28: #{run_model.1} parent=0 // pred_region
    _
  $region29: #{run_model.1} parent=0 // pred_fallthru
    _

</llo_original>
